<compile_context>
chip_gen: v6e
topology: v6e:2x2x1
jax: 0.10.0
libtpu: 0.0.40
codegen_flags: <defaults>
</compile_context>

<pallas_src>
import functools

import jax
import jax.numpy as jnp
from jax.experimental import pallas as pl
from jax.experimental.pallas import tpu as pltpu

# ------------------------- small synthetic config ---------------------------
IMG = 32                       # img_size        (PyTorch default: 224)
EMBED = [64, 32, 16, 8, 4]     # embed_dims      (PyTorch default: [384,128,64,16,4])
HEADS = [1, 2, 4, 8]
SR = [8, 4, 2, 1]
DEPTHS = [2, 3, 2, 2]          # only depths[2], depths[3] are used by DecoderC
DTYPE = jnp.float32

# MXU operand dtype (accumulation is always float32).  bfloat16 runs the MXU at
# full rate on v6e/v7x and halves weight/activation DMA bytes.
MXU_DTYPE = jnp.bfloat16

_PPARAMS = pltpu.CompilerParams(dimension_semantics=("parallel",))
_ROW_TILE_CAP = 1024
_BN_SCALE = (1.0 + 1e-5) ** -0.5   # eval BatchNorm2d with default running stats


# ============================ in-kernel helpers ==============================
def _ln(x, w, b, eps=1e-5):
    """LayerNorm over the last dim of an f32 value; w/b are (1, C)."""
    mu = jnp.mean(x, axis=-1, keepdims=True)
    xc = x - mu
    var = jnp.mean(xc * xc, axis=-1, keepdims=True)
    return xc * jax.lax.rsqrt(var + eps) * w.astype(jnp.float32) + b.astype(jnp.float32)


def _mm(a, b):
    """MXU matmul with MXU_DTYPE operands and f32 accumulation."""
    return jnp.dot(a.astype(MXU_DTYPE), b.astype(MXU_DTYPE),
                   preferred_element_type=jnp.float32)


def _softmax(s):
    s = s - jnp.max(s, axis=-1, keepdims=True)
    p = jnp.exp(s)
    return p * pl.reciprocal(jnp.sum(p, axis=-1, keepdims=True), approx=True)


# ====================== row-tiled matmul family (Pallas) =====================
def _linear_kernel(x_ref, w_ref, b_ref, o_ref):
    y = _mm(x_ref[...], w_ref[...]) + b_ref[...].astype(jnp.float32)
    o_ref[...] = y.astype(o_ref.dtype)


def _ln_linear_kernel(x_ref, lnw_ref, lnb_ref, w_ref, b_ref, o_ref):
    xn = _ln(x_ref[...].astype(jnp.float32), lnw_ref[...], lnb_ref[...])
    y = _mm(xn, w_ref[...]) + b_ref[...].astype(jnp.float32)
    o_ref[...] = y.astype(o_ref.dtype)


def _linear_ln_kernel(x_ref, w_ref, b_ref, lnw_ref, lnb_ref, o_ref):
    y = _mm(x_ref[...], w_ref[...]) + b_ref[...].astype(jnp.float32)
    o_ref[...] = _ln(y, lnw_ref[...], lnb_ref[...]).astype(o_ref.dtype)


def _cat_linear_kernel(x_ref, e_ref, wa_ref, wb_ref, b_ref, o_ref):
    y = _mm(x_ref[...], wa_ref[...]) + _mm(e_ref[...], wb_ref[...])
    o_ref[...] = (y + b_ref[...].astype(jnp.float32)).astype(o_ref.dtype)


def _mlp2_head_kernel(x_ref, w2_ref, b2_ref, wh_ref, bh_ref, o_ref):
    y = _mm(x_ref[...], w2_ref[...]) + b2_ref[...].astype(jnp.float32)
    m = _mm(y, wh_ref[...]) + bh_ref[...].astype(jnp.float32)
    o_ref[...] = m.astype(o_ref.dtype)


def _rows_call(kernel, row_inputs, const_inputs, n_out):
    """Run `kernel` over row tiles.  row_inputs: list of (M, K_i) arrays tiled
    along rows (padded to a tile multiple); const_inputs: 2-D arrays broadcast
    to every tile.  Returns (M, n_out)."""
    M = row_inputs[0].shape[0]
    tile = M if M <= _ROW_TILE_CAP else _ROW_TILE_CAP
    pad = (-M) % tile
    if pad:
        row_inputs = [jnp.concatenate(
            [r, jnp.zeros((pad, r.shape[1]), r.dtype)], axis=0) for r in row_inputs]
    Mp = M + pad
    in_specs = ([pl.BlockSpec((tile, r.shape[1]), lambda i: (i, 0)) for r in row_inputs]
                + [pl.BlockSpec(c.shape, lambda i: (0, 0)) for c in const_inputs])
    out = pl.pallas_call(
        kernel,
        out_shape=jax.ShapeDtypeStruct((Mp, n_out), row_inputs[0].dtype),
        grid=(Mp // tile,),
        in_specs=in_specs,
        out_specs=pl.BlockSpec((tile, n_out), lambda i: (i, 0)),
        compiler_params=_PPARAMS,
    )(*row_inputs, *const_inputs)
    return out[:M]


def linear(x, w, b):
    K, N = w.shape
    lead = x.shape[:-1]
    out = _rows_call(_linear_kernel, [x.reshape(-1, K)], [w, b.reshape(1, N)], N)
    return out.reshape(lead + (N,))


def ln_linear(x, ln_w, ln_b, w, b):
    K, N = w.shape
    lead = x.shape[:-1]
    out = _rows_call(_ln_linear_kernel, [x.reshape(-1, K)],
                     [ln_w.reshape(1, K), ln_b.reshape(1, K), w, b.reshape(1, N)], N)
    return out.reshape(lead + (N,))


def linear_ln(x, w, b, ln_w, ln_b):
    K, N = w.shape
    lead = x.shape[:-1]
    out = _rows_call(_linear_ln_kernel, [x.reshape(-1, K)],
                     [w, b.reshape(1, N), ln_w.reshape(1, N), ln_b.reshape(1, N)], N)
    return out.reshape(lead + (N,))


def cat_linear(x, e, wa, wb, b):
    N = wa.shape[1]
    lead = x.shape[:-1]
    out = _rows_call(_cat_linear_kernel,
                     [x.reshape(-1, x.shape[-1]), e.reshape(-1, e.shape[-1])],
                     [wa, wb, b.reshape(1, N)], N)
    return out.reshape(lead + (N,))


def mlp2_head(x, w2, b2, wh, bh):
    N = wh.shape[1]
    lead = x.shape[:-1]
    out = _rows_call(_mlp2_head_kernel, [x.reshape(-1, x.shape[-1])],
                     [w2, b2.reshape(1, w2.shape[1]), wh, bh.reshape(1, N)], N)
    return out.reshape(lead + (N,))


# ================= fused lpu 3x3 conv + residual + LayerNorm =================
def _lpu_ln_kernel(x_ref, w_ref, b_ref, lnw_ref, lnb_ref, o_ref, *, M, Wp):
    acc = None
    for di in range(3):
        for dj in range(3):
            off = di * Wp + dj
            t = _mm(x_ref[0, off:off + M, :], w_ref[di * 3 + dj])
            acc = t if acc is None else acc + t
    center = x_ref[0, Wp + 1:Wp + 1 + M, :].astype(jnp.float32)   # residual
    y = acc + b_ref[...].astype(jnp.float32) + center
    o_ref[0] = _ln(y, lnw_ref[...], lnb_ref[...]).astype(o_ref.dtype)


def lpu_conv_ln(x_nhwc, w9, b, ln_w, ln_b):
    """Full 3x3 conv (stride 1, pad 1) + residual + LayerNorm, fused.
    Uses a row-flattened, column-padded layout so the in-kernel im2col is 9
    contiguous 2-D slices (no HBM 9xC materialization).  w9: (9, C, C)."""
    B, H, W, C = x_nhwc.shape
    Wp = W + 2
    M = H * Wp
    xw = jnp.pad(x_nhwc, ((0, 0), (0, 0), (1, 1), (0, 0))).reshape(B, M, C)
    xfp = jnp.concatenate([jnp.zeros((B, Wp, C), x_nhwc.dtype), xw,
                           jnp.zeros((B, Wp + 8, C), x_nhwc.dtype)], axis=1)
    Rp = xfp.shape[1]
    out = pl.pallas_call(
        functools.partial(_lpu_ln_kernel, M=M, Wp=Wp),
        out_shape=jax.ShapeDtypeStruct((B, M, C), x_nhwc.dtype),
        grid=(B,),
        in_specs=[pl.BlockSpec((1, Rp, C), lambda i: (i, 0, 0)),
                  pl.BlockSpec((9, C, C), lambda i: (0, 0, 0)),
                  pl.BlockSpec((1, C), lambda i: (0, 0)),
                  pl.BlockSpec((1, C), lambda i: (0, 0)),
                  pl.BlockSpec((1, C), lambda i: (0, 0))],
        out_specs=pl.BlockSpec((1, M, C), lambda i: (i, 0, 0)),
        compiler_params=_PPARAMS,
    )(xfp, w9, b.reshape(1, C), ln_w.reshape(1, C), ln_b.reshape(1, C))
    return out.reshape(B, H, Wp, C)[:, :, :W, :].reshape(B, H * W, C)


# ================ fused depthwise 3x3 conv (Block.proj) + residual ===========
def _dwconv_res_kernel(x_ref, w_ref, b_ref, o_ref, *, M, Wp):
    acc = None
    for di in range(3):
        for dj in range(3):
            off = di * Wp + dj
            j = di * 3 + dj
            t = x_ref[0, off:off + M, :].astype(jnp.float32) * \
                w_ref[j:j + 1, :].astype(jnp.float32)
            acc = t if acc is None else acc + t
    center = x_ref[0, Wp + 1:Wp + 1 + M, :].astype(jnp.float32)   # residual
    o_ref[0] = (acc + b_ref[...].astype(jnp.float32) + center).astype(o_ref.dtype)


def dwconv3x3_res(x_tok, H, W, w9, b):
    """Depthwise 3x3 conv (stride 1, pad 1) + residual on row-major tokens."""
    B, N, C = x_tok.shape
    Wp = W + 2
    M = H * Wp
    xw = jnp.pad(x_tok.reshape(B, H, W, C),
                 ((0, 0), (0, 0), (1, 1), (0, 0))).reshape(B, M, C)
    xfp = jnp.concatenate([jnp.zeros((B, Wp, C), x_tok.dtype), xw,
                           jnp.zeros((B, Wp + 8, C), x_tok.dtype)], axis=1)
    Rp = xfp.shape[1]
    out = pl.pallas_call(
        functools.partial(_dwconv_res_kernel, M=M, Wp=Wp),
        out_shape=jax.ShapeDtypeStruct((B, M, C), x_tok.dtype),
        grid=(B,),
        in_specs=[pl.BlockSpec((1, Rp, C), lambda i: (i, 0, 0)),
                  pl.BlockSpec((9, C), lambda i: (0, 0)),
                  pl.BlockSpec((1, C), lambda i: (0, 0))],
        out_specs=pl.BlockSpec((1, M, C), lambda i: (i, 0, 0)),
        compiler_params=_PPARAMS,
    )(xfp, w9, b.reshape(1, C))
    return out.reshape(B, H, Wp, C)[:, :, :W, :].reshape(B, N, C)


# ================= fused Block attention (LN + QKV + attn + proj) ============
def _block_attn_sr1_kernel(x_ref, lnw_ref, lnb_ref, wqkv_ref, bqkv_ref,
                           wproj_ref, bproj_ref, rel_ref, o_ref, *, heads, scale):
    x = x_ref[0].astype(jnp.float32)                    # (N, C)
    C = x.shape[-1]
    dh = C // heads
    xn = _ln(x, lnw_ref[...], lnb_ref[...])
    qkv = _mm(xn, wqkv_ref[...]) + bqkv_ref[...].astype(jnp.float32)
    q, k, v = qkv[:, :C], qkv[:, C:2 * C], qkv[:, 2 * C:]
    wproj = wproj_ref[...]
    y = None
    for h in range(heads):
        qh = q[:, h * dh:(h + 1) * dh]
        kh = k[:, h * dh:(h + 1) * dh]
        vh = v[:, h * dh:(h + 1) * dh]
        s = _mm(qh, kh.T) * scale + rel_ref[h].astype(jnp.float32)
        p = _softmax(s)
        oh = _mm(p, vh)
        t = _mm(oh, wproj[h * dh:(h + 1) * dh, :])      # per-head slice of proj
        y = t if y is None else y + t
    y = y + bproj_ref[...].astype(jnp.float32)
    o_ref[0] = (x + y).astype(o_ref.dtype)


def _block_attn_sr_kernel(x_ref, pat_ref, lnw_ref, lnb_ref, wq_ref, bq_ref,
                          wkv_ref, bkv_ref, srw_ref, srb_ref, wproj_ref,
                          bproj_ref, rel_ref, o_ref, *, heads, scale, rr):
    x = x_ref[0].astype(jnp.float32)                    # (N, C)
    C = x.shape[-1]
    dh = C // heads
    xn = _ln(x, lnw_ref[...], lnb_ref[...])
    q = _mm(xn, wq_ref[...]) + bq_ref[...].astype(jnp.float32)
    # sr: depthwise r x r stride-r conv on LN'd tokens (+ eval BatchNorm).
    kv_in = None
    for j in range(rr):
        pj = _ln(pat_ref[0, j].astype(jnp.float32), lnw_ref[...], lnb_ref[...])
        t = pj * srw_ref[j:j + 1, :].astype(jnp.float32)
        kv_in = t if kv_in is None else kv_in + t
    kv_in = (kv_in + srb_ref[...].astype(jnp.float32)) * _BN_SCALE
    kv = _mm(kv_in, wkv_ref[...]) + bkv_ref[...].astype(jnp.float32)
    k, v = kv[:, :C], kv[:, C:]
    wproj = wproj_ref[...]
    y = None
    for h in range(heads):
        qh = q[:, h * dh:(h + 1) * dh]
        kh = k[:, h * dh:(h + 1) * dh]
        vh = v[:, h * dh:(h + 1) * dh]
        s = _mm(qh, kh.T) * scale + rel_ref[h].astype(jnp.float32)
        p = _softmax(s)
        oh = _mm(p, vh)
        t = _mm(oh, wproj[h * dh:(h + 1) * dh, :])
        y = t if y is None else y + t
    y = y + bproj_ref[...].astype(jnp.float32)
    o_ref[0] = (x + y).astype(o_ref.dtype)


def extract_sr_patches(x_tok, H, W, r):
    """Rearrange row-major tokens into (B, r*r, Nk, C) patches (data movement
    only; LayerNorm commutes with this reorder so it stays inside the kernel)."""
    B, N, C = x_tok.shape
    pat = x_tok.reshape(B, H // r, r, W // r, r, C)
    pat = pat.transpose(0, 2, 4, 1, 3, 5).reshape(B, r * r, (H // r) * (W // r), C)
    return pat


def block_attention_fused(p, x, H, W, rel):
    B, N, C = x.shape
    heads = p['heads']
    scale = (C // heads) ** -0.5
    relH, relN, relNk = rel.shape
    if p['sr_ratio'] == 1:
        kern = functools.partial(_block_attn_sr1_kernel, heads=heads, scale=scale)
        return pl.pallas_call(
            kern,
            out_shape=jax.ShapeDtypeStruct((B, N, C), x.dtype),
            grid=(B,),
            in_specs=[pl.BlockSpec((1, N, C), lambda b: (b, 0, 0)),
                      pl.BlockSpec((1, C), lambda b: (0, 0)),
                      pl.BlockSpec((1, C), lambda b: (0, 0)),
                      pl.BlockSpec((C, 3 * C), lambda b: (0, 0)),
                      pl.BlockSpec((1, 3 * C), lambda b: (0, 0)),
                      pl.BlockSpec((C, C), lambda b: (0, 0)),
                      pl.BlockSpec((1, C), lambda b: (0, 0)),
                      pl.BlockSpec((relH, relN, relNk), lambda b: (0, 0, 0))],
            out_specs=pl.BlockSpec((1, N, C), lambda b: (b, 0, 0)),
            compiler_params=_PPARAMS,
        )(x, p['norm1_w'].reshape(1, C), p['norm1_b'].reshape(1, C),
          p['qkv_w'], p['qkv_b'].reshape(1, 3 * C),
          p['proj_w'], p['proj_b'].reshape(1, C), rel)
    else:
        r = p['sr_ratio']
        rr = r * r
        pat = extract_sr_patches(x, H, W, r)
        Nk = (H // r) * (W // r)
        kern = functools.partial(_block_attn_sr_kernel, heads=heads, scale=scale, rr=rr)
        return pl.pallas_call(
            kern,
            out_shape=jax.ShapeDtypeStruct((B, N, C), x.dtype),
            grid=(B,),
            in_specs=[pl.BlockSpec((1, N, C), lambda b: (b, 0, 0)),
                      pl.BlockSpec((1, rr, Nk, C), lambda b: (b, 0, 0, 0)),
                      pl.BlockSpec((1, C), lambda b: (0, 0)),
                      pl.BlockSpec((1, C), lambda b: (0, 0)),
                      pl.BlockSpec((C, C), lambda b: (0, 0)),
                      pl.BlockSpec((1, C), lambda b: (0, 0)),
                      pl.BlockSpec((C, 2 * C), lambda b: (0, 0)),
                      pl.BlockSpec((1, 2 * C), lambda b: (0, 0)),
                      pl.BlockSpec((rr, C), lambda b: (0, 0)),
                      pl.BlockSpec((1, C), lambda b: (0, 0)),
                      pl.BlockSpec((C, C), lambda b: (0, 0)),
                      pl.BlockSpec((1, C), lambda b: (0, 0)),
                      pl.BlockSpec((relH, relN, relNk), lambda b: (0, 0, 0))],
            out_specs=pl.BlockSpec((1, N, C), lambda b: (b, 0, 0)),
            compiler_params=_PPARAMS,
        )(x, pat, p['norm1_w'].reshape(1, C), p['norm1_b'].reshape(1, C),
          p['q_w'], p['q_b'].reshape(1, C),
          p['kv_w'], p['kv_b'].reshape(1, 2 * C),
          p['sr_w'], p['sr_b'].reshape(1, C),
          p['proj_w'], p['proj_b'].reshape(1, C), rel)


# ============= fused CrossAttention (+ residual + norm3), no rel =============
def _cross_attn_kernel(x_ref, x0_ref, wq_ref, wk_ref, wv_ref, wproj_ref,
                       bproj_ref, ln3w_ref, ln3b_ref, o_ref, *, heads, scale):
    x = x_ref[0].astype(jnp.float32)                    # (N1, E) - q src & residual
    x0 = x0_ref[0].astype(jnp.float32)                  # (N0, Cin) - k/v src
    E = x.shape[-1]
    dh = E // heads
    q = _mm(x, wq_ref[...])
    k = _mm(x0, wk_ref[...])
    v = _mm(x0, wv_ref[...])
    wproj = wproj_ref[...]
    y = None
    for h in range(heads):
        qh = q[:, h * dh:(h + 1) * dh]
        kh = k[:, h * dh:(h + 1) * dh]
        vh = v[:, h * dh:(h + 1) * dh]
        s = _mm(qh, kh.T) * scale                       # no relative_pos here
        p = _softmax(s)
        oh = _mm(p, vh)
        t = _mm(oh, wproj[h * dh:(h + 1) * dh, :])
        y = t if y is None else y + t
    y = y + bproj_ref[...].astype(jnp.float32)
    o_ref[0] = _ln(x + y, ln3w_ref[...], ln3b_ref[...]).astype(o_ref.dtype)


def cross_attention_fused(p, x, x0, ln3_w, ln3_b):
    B, N1, E = x.shape
    _, N0, Cin = x0.shape
    heads = p['heads']
    scale = (E // heads) ** -0.5
    kern = functools.partial(_cross_attn_kernel, heads=heads, scale=scale)
    return pl.pallas_call(
        kern,
        out_shape=jax.ShapeDtypeStruct((B, N1, E), x.dtype),
        grid=(B,),
        in_specs=[pl.BlockSpec((1, N1, E), lambda b: (b, 0, 0)),
                  pl.BlockSpec((1, N0, Cin), lambda b: (b, 0, 0)),
                  pl.BlockSpec((E, E), lambda b: (0, 0)),
                  pl.BlockSpec((Cin, E), lambda b: (0, 0)),
                  pl.BlockSpec((Cin, E), lambda b: (0, 0)),
                  pl.BlockSpec((E, E), lambda b: (0, 0)),
                  pl.BlockSpec((1, E), lambda b: (0, 0)),
                  pl.BlockSpec((1, E), lambda b: (0, 0)),
                  pl.BlockSpec((1, E), lambda b: (0, 0))],
        out_specs=pl.BlockSpec((1, N1, E), lambda b: (b, 0, 0)),
        compiler_params=_PPARAMS,
    )(x, x0, p['q_w'], p['k_w'], p['v_w'], p['proj_w'], p['proj_b'].reshape(1, E),
      ln3_w.reshape(1, E), ln3_b.reshape(1, E))


# ================================ JAX glue ===================================
def gelu(x):
    # torch.nn.GELU() default == exact erf GELU (kept in plain JAX so Mosaic
    # never has to lower erf; everything around it is fused Pallas).
    return jax.nn.gelu(x, approximate=False)


def fold(cols, C, k, s, pad, out_hw):
    """nn.Fold: cols (B, C*k*k, L) -> (B, C, out_hw, out_hw), summing overlaps.
    TODO(synk): pure data movement kept in plain JAX (strided .at[].add)."""
    B = cols.shape[0]
    Lh = (out_hw + 2 * pad - k) // s + 1
    cols = cols.reshape(B, C, k, k, Lh, Lh)
    out = jnp.zeros((B, C, out_hw + 2 * pad, out_hw + 2 * pad), cols.dtype)
    for ki in range(k):
        for kj in range(k):
            out = out.at[:, :, ki:ki + s * Lh:s, kj:kj + s * Lh:s].add(
                cols[:, :, ki, kj])
    return out[:, :, pad:pad + out_hw, pad:pad + out_hw]


# ============================ module forward passes ==========================
def patch_embed_forward(p, x_nchw, enc_fea):
    B, C, H, W = x_nchw.shape
    k, s, pad = p['kernel_size'], p['stride'], p['padding']
    tokens = x_nchw.reshape(B, C, H * W).transpose(0, 2, 1)          # (B, N, C)
    proj = linear(tokens, p['project_w'], p['project_b'])            # (B, N, C*k*k)
    out_hw = p['img_size'] * s
    folded = fold(proj.transpose(0, 2, 1), C, k, s, pad, out_hw)     # (B, C, o, o)
    x_nhwc = folded.transpose(0, 2, 3, 1)
    # lpu 3x3 conv + residual + LayerNorm(norm), fused (im2col stays in VMEM)
    x_tok = lpu_conv_ln(x_nhwc, p['lpu_w'], p['lpu_b'], p['norm_w'], p['norm_b'])
    x0 = x_tok
    Hn = Wn = p['img_size'] * p['patch_size']
    if p['fuse']:
        h = cat_linear(x_tok, enc_fea, p['cf_w1a'], p['cf_w1b'], p['cf_b1'])
        x2 = linear_ln(gelu(h), p['cf_w2'], p['cf_b2'], p['norm2_w'], p['norm2_b'])
        out = cross_attention_fused(p['interact'], x2, x0, p['norm3_w'], p['norm3_b'])
    else:
        h = linear(x_tok, p['cf_w1'], p['cf_b1'])
        out = linear_ln(gelu(h), p['cf_w2'], p['cf_b2'], p['norm2_w'], p['norm2_b'])
    return out, (Hn, Wn)


def block_forward(p, x, H, W, rel):
    x = block_attention_fused(p, x, H, W, rel)       # LN1 + attn + proj + residual
    return dwconv3x3_res(x, H, W, p['dw_w'], p['dw_b'])  # depthwise conv + residual


def decoder_forward(P, x, x_1_8, x_1_4):
    B, N, C = x.shape
    s16 = IMG // 16
    # --- 1/16 saliency head: (LN + mlp1) -> gelu -> (mlp2 + pre_1_16) fused ---
    h = ln_linear(x, P['norm_w'], P['norm_b'], P['mlp_w1'], P['mlp_b1'])
    m16 = mlp2_head(gelu(h), P['mlp_w2'], P['mlp_b2'], P['pre16_w'], P['pre16_b'])
    mask_1_16 = m16.transpose(0, 2, 1).reshape(B, 1, s16, s16)
    # --- decode to 1/8 --- (generalised "reshape(B, C, 14, 14)")
    x_img = x.transpose(0, 2, 1).reshape(B, C, s16, s16)
    x, (H, W) = patch_embed_forward(P['pe_d'], x_img, x_1_8)
    for blk in P['blocks_d']:
        x = block_forward(blk, x, H, W, P['rel_d'])
    mask_1_8 = linear(x, P['pre8_w'], P['pre8_b'])
    mask_1_8 = mask_1_8.transpose(0, 2, 1).reshape(B, 1, IMG // 8, IMG // 8)
    # --- decode to 1/4 ---
    x_img = x.reshape(B, H, W, -1).transpose(0, 3, 1, 2)
    x, (H, W) = patch_embed_forward(P['pe_c'], x_img, x_1_4)
    for blk in P['blocks_c']:
        x = block_forward(blk, x, H, W, P['rel_c'])
    mask_1_4 = linear(x, P['pre4_w'], P['pre4_b'])
    mask_1_4 = mask_1_4.transpose(0, 2, 1).reshape(B, 1, IMG // 4, IMG // 4)
    # --- decode to 1/1 ---
    x_img = x.reshape(B, H, W, -1).transpose(0, 3, 1, 2)
    x, (H, W) = patch_embed_forward(P['pe_b'], x_img, None)
    mask_1_1 = linear(x, P['pre1_w'], P['pre1_b'])
    mask_1_1 = mask_1_1.transpose(0, 2, 1).reshape(B, 1, IMG, IMG)
    # --- sigmoids ---
    m_1, m_4 = jax.nn.sigmoid(mask_1_1), jax.nn.sigmoid(mask_1_4)
    m_8, m_16 = jax.nn.sigmoid(mask_1_8), jax.nn.sigmoid(mask_1_16)
    return [mask_1_16, mask_1_8, mask_1_4, mask_1_1, m_16, m_8, m_4, m_1]


# ============================ parameter construction =========================
class KeyGen:
    def __init__(self, seed):
        self._key = jax.random.PRNGKey(seed)

    def __call__(self):
        self._key, sub = jax.random.split(self._key)
        return sub


def lin_init(kg, fin, fout):
    return jax.random.normal(kg(), (fin, fout), DTYPE) * 0.02, jnp.zeros((fout,), DTYPE)


def ln_init(dim):
    return jnp.ones((dim,), DTYPE), jnp.zeros((dim,), DTYPE)


def cross_attn_init(kg, dim1, dim2, dim, heads):
    qw, _ = lin_init(kg, dim1, dim)                   # qkv_bias=False
    kw, _ = lin_init(kg, dim2, dim)
    vw, _ = lin_init(kg, dim2, dim)
    pw, pb = lin_init(kg, dim, dim1)
    return dict(heads=heads, dim=dim, q_w=qw, k_w=kw, v_w=vw, proj_w=pw, proj_b=pb)


def patch_embed_init(kg, img_size, patch_size, in_chans, embed_dim,
                     kernel_size, stride, padding, fuse):
    p = dict(img_size=img_size, patch_size=patch_size, kernel_size=kernel_size,
             stride=stride, padding=padding, fuse=fuse)
    p['project_w'], p['project_b'] = lin_init(kg, in_chans,
                                              in_chans * kernel_size * kernel_size)
    p['lpu_w'] = jax.random.normal(kg(), (9, in_chans, in_chans), DTYPE) * 0.02
    p['lpu_b'] = jnp.zeros((in_chans,), DTYPE)
    p['norm_w'], p['norm_b'] = ln_init(in_chans)
    p['norm2_w'], p['norm2_b'] = ln_init(embed_dim)
    if fuse:
        p['cf_w1a'] = jax.random.normal(kg(), (in_chans, in_chans), DTYPE) * 0.02
        p['cf_w1b'] = jax.random.normal(kg(), (embed_dim, in_chans), DTYPE) * 0.02
        p['cf_b1'] = jnp.zeros((in_chans,), DTYPE)
        p['cf_w2'], p['cf_b2'] = lin_init(kg, in_chans, embed_dim)
        p['norm3_w'], p['norm3_b'] = ln_init(embed_dim)
        p['interact'] = cross_attn_init(kg, embed_dim, in_chans, embed_dim, 4)
    else:
        p['cf_w1'], p['cf_b1'] = lin_init(kg, in_chans, in_chans)
        p['cf_w2'], p['cf_b2'] = lin_init(kg, in_chans, embed_dim)
    return p


def block_init(kg, dim, heads, sr_ratio):
    p = dict(heads=heads, sr_ratio=sr_ratio)
    p['norm1_w'], p['norm1_b'] = ln_init(dim)
    if sr_ratio == 1:
        # fused QKV weight (columns: [q | k | v]); qkv_bias=True
        p['qkv_w'] = jax.random.normal(kg(), (dim, 3 * dim), DTYPE) * 0.02
        p['qkv_b'] = jnp.zeros((3 * dim,), DTYPE)
    else:
        p['q_w'], p['q_b'] = lin_init(kg, dim, dim)
        p['kv_w'] = jax.random.normal(kg(), (dim, 2 * dim), DTYPE) * 0.02
        p['kv_b'] = jnp.zeros((2 * dim,), DTYPE)
        p['sr_w'] = jax.random.normal(kg(), (sr_ratio * sr_ratio, dim), DTYPE) * 0.02
        p['sr_b'] = jnp.zeros((dim,), DTYPE)
    p['proj_w'], p['proj_b'] = lin_init(kg, dim, dim)
    p['dw_w'] = jax.random.normal(kg(), (9, dim), DTYPE) * 0.02   # depthwise 3x3
    p['dw_b'] = jnp.zeros((dim,), DTYPE)
    return p


def decoder_init(kg):
    P = {}
    P['norm_w'], P['norm_b'] = ln_init(EMBED[0])
    P['mlp_w1'], P['mlp_b1'] = lin_init(kg, EMBED[0], EMBED[0])
    P['mlp_w2'], P['mlp_b2'] = lin_init(kg, EMBED[0], EMBED[1])
    P['pre16_w'], P['pre16_b'] = lin_init(kg, EMBED[1], 1)
    P['pre8_w'], P['pre8_b'] = lin_init(kg, EMBED[1], 1)
    P['pre4_w'], P['pre4_b'] = lin_init(kg, EMBED[2], 1)
    P['pre1_w'], P['pre1_b'] = lin_init(kg, EMBED[3], 1)
    P['pe_b'] = patch_embed_init(kg, IMG // 4, 4, EMBED[2], EMBED[3], 7, 4, 2, False)
    P['pe_c'] = patch_embed_init(kg, IMG // 8, 2, EMBED[1], EMBED[2], 3, 2, 1, True)
    P['pe_d'] = patch_embed_init(kg, IMG // 16, 2, EMBED[0], EMBED[1], 3, 2, 1, True)
    np_c = (IMG // 8) * 2 * ((IMG // 8) * 2)          # patch_embed_c.num_patches
    np_d = (IMG // 16) * 2 * ((IMG // 16) * 2)        # patch_embed_d.num_patches
    P['rel_c'] = jax.random.normal(kg(), (HEADS[2], np_c, np_c // SR[2] // SR[2]), DTYPE)
    P['rel_d'] = jax.random.normal(kg(), (HEADS[3], np_d, np_d // SR[3] // SR[3]), DTYPE)
    P['blocks_c'] = [block_init(kg, EMBED[2], HEADS[2], SR[2]) for _ in range(DEPTHS[2])]
    P['blocks_d'] = [block_init(kg, EMBED[1], HEADS[3], SR[3]) for _ in range(DEPTHS[3])]
    return P


# ==================================== main ===================================
if __name__ == "__main__":
    params = decoder_init(KeyGen(1))

    key = jax.random.PRNGKey(0)
    k1, k2, k3 = jax.random.split(key, 3)
    B = 2
    s16, s8, s4 = IMG // 16, IMG // 8, IMG // 4
    x = jax.random.normal(k1, (B, s16 * s16, EMBED[0]), DTYPE)        # (2, 4, 64)
    x_1_8 = jax.random.normal(k2, (B, s8 * s8, EMBED[1]), DTYPE)      # (2, 16, 32)
    x_1_4 = jax.random.normal(k3, (B, s4 * s4, EMBED[2]), DTYPE)      # (2, 64, 16)

    outs = decoder_forward(params, x, x_1_8, x_1_4)
    outs = jax.block_until_ready(outs)

    expected = [(B, 1, s16, s16), (B, 1, s8, s8), (B, 1, s4, s4), (B, 1, IMG, IMG)] * 2
    assert all(o.shape == e for o, e in zip(outs, expected)), \
        [o.shape for o in outs]
    assert all(bool(jnp.all(jnp.isfinite(o))) for o in outs)
    print("KERNEL_OK")
</pallas_src>

<mosaic_0001>
module attributes {stable_mosaic.version = 11 : i64} {
  func.func @_ln_linear_kernel(%arg0: i32, %arg1: memref<8x64xf32, #tpu.memory_space<vmem>>, %arg2: memref<1x64xf32, #tpu.memory_space<vmem>>, %arg3: memref<1x64xf32, #tpu.memory_space<vmem>>, %arg4: memref<64x64xf32, #tpu.memory_space<vmem>>, %arg5: memref<1x64xf32, #tpu.memory_space<vmem>>, %arg6: memref<8x64xf32, #tpu.memory_space<vmem>>) attributes {dimension_semantics = [#tpu.dimension_semantics<parallel>], iteration_bounds = array<i64: 1>, scalar_prefetch = 0 : i64, scratch_operands = 0 : i64, tpu.core_type = #tpu.core_type<tc>, window_params = [{transform_indices = @transform_0, window_bounds = array<i64: 8, 64>}, {pipeline_mode = #tpu.pipeline_mode<synchronous>, transform_indices = @transform_1, window_bounds = array<i64: 1, 64>}, {pipeline_mode = #tpu.pipeline_mode<synchronous>, transform_indices = @transform_2, window_bounds = array<i64: 1, 64>}, {pipeline_mode = #tpu.pipeline_mode<synchronous>, transform_indices = @transform_3, window_bounds = array<i64: 64, 64>}, {pipeline_mode = #tpu.pipeline_mode<synchronous>, transform_indices = @transform_4, window_bounds = array<i64: 1, 64>}, {transform_indices = @transform_5, window_bounds = array<i64: 8, 64>}]} {
    %c0 = arith.constant 0 : index
    %c0_0 = arith.constant 0 : index
    %0 = vector.load %arg1[%c0, %c0_0] : memref<8x64xf32, #tpu.memory_space<vmem>>, vector<8x64xf32>
    %c0_1 = arith.constant 0 : index
    %c0_2 = arith.constant 0 : index
    %1 = vector.load %arg2[%c0_1, %c0_2] : memref<1x64xf32, #tpu.memory_space<vmem>>, vector<1x64xf32>
    %c0_3 = arith.constant 0 : index
    %c0_4 = arith.constant 0 : index
    %2 = vector.load %arg3[%c0_3, %c0_4] : memref<1x64xf32, #tpu.memory_space<vmem>>, vector<1x64xf32>
    %cst = arith.constant dense<0.000000e+00> : vector<8xf32>
    %3 = vector.multi_reduction <add>, %0, %cst [1] : vector<8x64xf32> to vector<8xf32>
    %4 = vector.shape_cast %3 : vector<8xf32> to vector<8x1xf32>
    %cst_5 = arith.constant 6.400000e+01 : f32
    %5 = vector.broadcast %cst_5 : f32 to vector<8x1xf32>
    %6 = arith.divf %4, %5 : vector<8x1xf32>
    %7 = vector.broadcast %6 : vector<8x1xf32> to vector<8x64xf32>
    %8 = arith.subf %0, %7 : vector<8x64xf32>
    %9 = arith.mulf %8, %8 : vector<8x64xf32>
    %cst_6 = arith.constant dense<0.000000e+00> : vector<8xf32>
    %10 = vector.multi_reduction <add>, %9, %cst_6 [1] : vector<8x64xf32> to vector<8xf32>
    %11 = vector.shape_cast %10 : vector<8xf32> to vector<8x1xf32>
    %cst_7 = arith.constant 6.400000e+01 : f32
    %12 = vector.broadcast %cst_7 : f32 to vector<8x1xf32>
    %13 = arith.divf %11, %12 : vector<8x1xf32>
    %cst_8 = arith.constant 9.99999974E-6 : f32
    %14 = vector.broadcast %cst_8 : f32 to vector<8x1xf32>
    %15 = arith.addf %13, %14 : vector<8x1xf32>
    %16 = math.rsqrt %15 : vector<8x1xf32>
    %17 = vector.broadcast %16 : vector<8x1xf32> to vector<8x64xf32>
    %18 = arith.mulf %8, %17 : vector<8x64xf32>
    %19 = vector.broadcast %1 : vector<1x64xf32> to vector<8x64xf32>
    %20 = arith.mulf %18, %19 : vector<8x64xf32>
    %21 = vector.broadcast %2 : vector<1x64xf32> to vector<8x64xf32>
    %22 = arith.addf %20, %21 : vector<8x64xf32>
    %c0_9 = arith.constant 0 : index
    %c0_10 = arith.constant 0 : index
    %23 = vector.load %arg4[%c0_9, %c0_10] : memref<64x64xf32, #tpu.memory_space<vmem>>, vector<64x64xf32>
    %24 = arith.truncf %22 : vector<8x64xf32> to vector<8x64xbf16>
    %25 = arith.truncf %23 : vector<64x64xf32> to vector<64x64xbf16>
    %cst_11 = arith.constant dense<0.000000e+00> : vector<8x64xf32>
    %26 = tpu.matmul %24, %25, %cst_11 {dimension_numbers = #tpu.dot_dimension_numbers<[1], [0], [0], [1], [0, 0, 1, 1], [], []>} : vector<8x64xbf16>, vector<64x64xbf16>, vector<8x64xf32> -> vector<8x64xf32>
    %c0_12 = arith.constant 0 : index
    %c0_13 = arith.constant 0 : index
    %27 = vector.load %arg5[%c0_12, %c0_13] : memref<1x64xf32, #tpu.memory_space<vmem>>, vector<1x64xf32>
    %28 = vector.broadcast %27 : vector<1x64xf32> to vector<8x64xf32>
    %29 = arith.addf %26, %28 : vector<8x64xf32>
    %c0_14 = arith.constant 0 : index
    %c0_15 = arith.constant 0 : index
    %30 = vector.load %arg6[%c0_14, %c0_15] : memref<8x64xf32, #tpu.memory_space<vmem>>, vector<8x64xf32>
    tpu.vector_store %arg6[%c0_14, %c0_15], %29 {strides = array<i32>} : memref<8x64xf32, #tpu.memory_space<vmem>>, vector<8x64xf32>,
    return
  }
  func.func @transform_0(%arg0: i32) -> (i32, i32) {
    %c0_i32 = arith.constant 0 : i32
    %c0_i32_0 = arith.constant 0 : i32
    return %arg0, %c0_i32 : i32, i32
  }
  func.func @transform_1(%arg0: i32) -> (i32, i32) {
    %c0_i32 = arith.constant 0 : i32
    %c0_i32_0 = arith.constant 0 : i32
    %c0_i32_1 = arith.constant 0 : i32
    return %c0_i32, %c0_i32_0 : i32, i32
  }
  func.func @transform_2(%arg0: i32) -> (i32, i32) {
    %c0_i32 = arith.constant 0 : i32
    %c0_i32_0 = arith.constant 0 : i32
    %c0_i32_1 = arith.constant 0 : i32
    return %c0_i32, %c0_i32_0 : i32, i32
  }
  func.func @transform_3(%arg0: i32) -> (i32, i32) {
    %c0_i32 = arith.constant 0 : i32
    %c0_i32_0 = arith.constant 0 : i32
    %c0_i32_1 = arith.constant 0 : i32
    return %c0_i32, %c0_i32_0 : i32, i32
  }
  func.func @transform_4(%arg0: i32) -> (i32, i32) {
    %c0_i32 = arith.constant 0 : i32
    %c0_i32_0 = arith.constant 0 : i32
    %c0_i32_1 = arith.constant 0 : i32
    return %c0_i32, %c0_i32_0 : i32, i32
  }
  func.func @transform_5(%arg0: i32) -> (i32, i32) {
    %c0_i32 = arith.constant 0 : i32
    %c0_i32_0 = arith.constant 0 : i32
    return %arg0, %c0_i32 : i32, i32
  }
}

</mosaic_0001>

<llo_original>
// kernel: tpu_custom_call.1
$region0: #{tpu_custom_call.1}
  #allocation0 [shape = 'u32[]', space=smem, size = 0x4, offset = 0x4, fixed_abs, tag = 'smem constant byte address 0x4 - core index']
  #allocation1 [shape = 'u32[144,128]{1,0:T(1,128)}', space=vmem, size = 0x12000, scoped, tag = 'internal scratch']
  %s0 = inlined_call_operand.hbm [shape: f32[8,64], index: 0, kind: input, shape index: {}]
  %s1 = inlined_call_operand.vmem [shape: f32[1,64], index: 1, kind: input, shape index: {}]
  %s2 = inlined_call_operand.vmem [shape: f32[1,64], index: 2, kind: input, shape index: {}]
  %s3 = inlined_call_operand.hbm [shape: f32[64,64], index: 3, kind: input, shape index: {}]
  %s4 = inlined_call_operand.vmem [shape: f32[1,64], index: 4, kind: input, shape index: {}]
  %s5 = inlined_call_operand.hbm [shape: f32[8,64], index: 5, kind: output, shape index: {}]
  %s6 = sld [smem:[#allocation0]]
  $region38: #{tpu_custom_call.1} parent=0
    _
  %s8 = ssub.s32 1, %s6
  %s9 = scalar_select 0, %s8, %s6
  $region1: #{tpu_custom_call.1} parent=0
    #allocation2 [shape = 'u8[4096]{0}', space=vmem, size = 0x1000, scoped, tag = 'input window, operand 0, single buffered']
    #allocation3 [shape = 's32[1]{0}', space=sflag, size = 0x4, scoped, tag = 'scoped memory for tpu_custom_call.1']
    #allocation4 [shape = 's32[1]{0}', space=sflag, size = 0x4, scoped, tag = 'scoped memory for tpu_custom_call.1']
    #allocation5 [shape = 'u8[32768]{0}', space=vmem, size = 0x8000, scoped, tag = 'input window, operand 3, single buffered']
    #allocation6 [shape = 's32[1]{0}', space=sflag, size = 0x4, scoped, tag = 'scoped memory for tpu_custom_call.1']
    #allocation7 [shape = 'u8[4096]{0}', space=vmem, size = 0x1000, scoped, tag = 'output window, operand 0, single buffered']
    %10 = vsyncpa [#allocation3], 0
    %11 = vsyncpa [#allocation6], 0
    %12 = vsyncpa [#allocation4], 0
    // Predicated region
    $region2: #{tpu_custom_call.1} parent=1 // pred_check
      _
    $region3: #{tpu_custom_call.1} parent=1 // pred_check_branch
      %14 = sbr.rel (0) target = $region5
    $region4: #{tpu_custom_call.1} parent=1 // pred_region
      %s16 = ssub.s32 128, 128
      %17 = vsyncadd [#allocation3], %s16
      %s19 = sshll.u32 [#allocation2], 4
      %s20 = int_to_ptr.vmem [resolvable:$true] %s19
      %22 = dma.hbm_to_vmem [thread:$0]  %s0, 128, %s20, [#allocation3]
    $region5: #{tpu_custom_call.1} parent=1 // pred_fallthru
      _
    // Predicated region
    $region6: #{tpu_custom_call.1} parent=1 // pred_check
      _
    $region7: #{tpu_custom_call.1} parent=1 // pred_check_branch
      %24 = sbr.rel (0) target = $region9
    $region8: #{tpu_custom_call.1} parent=1 // pred_region
      _
    $region9: #{tpu_custom_call.1} parent=1 // pred_fallthru
      _
    // Predicated region
    $region10: #{tpu_custom_call.1} parent=1 // pred_check
      _
    $region11: #{tpu_custom_call.1} parent=1 // pred_check_branch
      %26 = sbr.rel (0) target = $region13
    $region12: #{tpu_custom_call.1} parent=1 // pred_region
      _
    $region13: #{tpu_custom_call.1} parent=1 // pred_fallthru
      _
    // Predicated region
    $region14: #{tpu_custom_call.1} parent=1 // pred_check
      _
    $region15: #{tpu_custom_call.1} parent=1 // pred_check_branch
      %28 = sbr.rel (0) target = $region17
    $region16: #{tpu_custom_call.1} parent=1 // pred_region
      %s30 = ssub.s32 1024, 1024
      %31 = vsyncadd [#allocation6], %s30
      %s32 = sshll.u32 [#allocation5], 4
      %s33 = int_to_ptr.vmem [resolvable:$true] %s32
      %38 = dma.hbm_to_vmem [thread:$0]  %s3, 1024, %s33, [#allocation6], 128, 128, 8
    $region17: #{tpu_custom_call.1} parent=1 // pred_fallthru
      _
    // Predicated region
    $region18: #{tpu_custom_call.1} parent=1 // pred_check
      _
    $region19: #{tpu_custom_call.1} parent=1 // pred_check_branch
      %40 = sbr.rel (0) target = $region21
    $region20: #{tpu_custom_call.1} parent=1 // pred_region
      _
    $region21: #{tpu_custom_call.1} parent=1 // pred_fallthru
      _
    // Predicated region
    $region22: #{tpu_custom_call.1} parent=1 // pred_check
      _
    $region23: #{tpu_custom_call.1} parent=1 // pred_check_branch
      %42 = sbr.rel (0) target = $region25
    $region24: #{tpu_custom_call.1} parent=1 // pred_region
      %43 = dma.done [#allocation3], 128
    $region25: #{tpu_custom_call.1} parent=1 // pred_fallthru
      _
    // Predicated region
    $region26: #{tpu_custom_call.1} parent=1 // pred_check
      _
    $region27: #{tpu_custom_call.1} parent=1 // pred_check_branch
      %45 = sbr.rel (0) target = $region29
    $region28: #{tpu_custom_call.1} parent=1 // pred_region
      %46 = dma.done [#allocation6], 1024
    $region29: #{tpu_custom_call.1} parent=1 // pred_fallthru
      _
    %v48 = vld [vmem:[#allocation2] sm:$0xff]
    %v49 = vld [vmem:[%s1] sm:$0x1]
    %v50 = vld [vmem:[%s2] sm:$0x1]
    %vm51 = vcmask 523264
    %v52 = vsel %vm51, %v48, 0.0
    %53 = vadd.xlane.f32.xlu0 %v52
    %v54 = vpop.xlane.xlu0 %53
    %v55 = vrcp.pop 64.0
    %v56 = vmul.f32 %v54, %v55
    %v57 = vsub.f32 %v48, %v56
    %v58 = vmul.f32 %v57, %v57
    %v59 = vsel %vm51, %v58, 0.0
    %60 = vadd.xlane.f32.xlu0 %v59
    %v61 = vpop.xlane.xlu0 %60
    %v62 = vmul.f32 %v61, %v55
    %v63 = vadd.f32 %v62, 1e-05
    %v64 = vrsqrt.pop %v63
    %v65 = vmul.f32 %v57, %v64
    %v67 = vlaneseq
    %v68 = vshrl.u32 %v67, 7
    %v69 = vsub.s32 0, %v68
    %v70 = vrot.slane %v49, %v69
    %v72 = vmul.f32 %v65, %v70
    %v74 = vlaneseq
    %v75 = vshrl.u32 %v74, 7
    %v76 = vsub.s32 0, %v75
    %v77 = vrot.slane %v50, %v76
    %v79 = vadd.f32 %v72, %v77
    %v80 = vld [vmem:[#allocation5] sm:$0xff]
    %v81 = vld [vmem:[#allocation5 + $0x8] sm:$0xff]
    %v82 = vld [vmem:[#allocation5 + $0x10] sm:$0xff]
    %v83 = vld [vmem:[#allocation5 + $0x18] sm:$0xff]
    %v84 = vld [vmem:[#allocation5 + $0x20] sm:$0xff]
    %v85 = vld [vmem:[#allocation5 + $0x28] sm:$0xff]
    %v86 = vld [vmem:[#allocation5 + $0x30] sm:$0xff]
    %v87 = vld [vmem:[#allocation5 + $0x38] sm:$0xff]
    %v88 = vpack.c.bf16 %v79, %v79
    %v89 = vpack.c.bf16 %v81, %v80
    %v90 = vpack.c.bf16 %v83, %v82
    %v91 = vpack.c.bf16 %v85, %v84
    %v92 = vpack.c.bf16 %v87, %v86
    %v93 = vld [vmem:[%s4] sm:$0x1]
    %v95 = vlaneseq
    %v96 = vshrl.u32 %v95, 7
    %v97 = vsub.s32 0, %v96
    %v98 = vrot.slane %v93, %v97
    %v101 = vsel %vm51, %v88, 0
    %103 = vmatprep.subr.bf16.mxu0 0
    %104 = vmatpush1.bf16.msra.mxu0 0
    %105 = vmatprep.subr.bf16.mxu0 0
    %106 = vmatpush1.bf16.msra.mxu0 0
    %107 = vmatprep.subr.bf16.mxu0 0
    %108 = vmatpush1.bf16.msra.mxu0 0
    %109 = vmatprep.subr.bf16.mxu0 0
    %110 = vmatpush1.bf16.msra.mxu0 0
    %111 = vmatprep.subr.bf16.mxu0 0
    %112 = vmatpush1.bf16.msra.mxu0 %v92
    %113 = vmatprep.subr.bf16.mxu0 0
    %114 = vmatpush1.bf16.msra.mxu0 %v91
    %115 = vmatprep.subr.bf16.mxu0 0
    %116 = vmatpush1.bf16.msra.mxu0 %v90
    %117 = vmatprep.subr.bf16.mxu0 0
    %118 = vmatpush1.bf16.msra.mxu0 %v89
    %119 = vmatprep.subr.bf16.mxu0 0
    %120 = vmatpush2.bf16.msra.mxu0 0
    %121 = vmatprep.subr.bf16.mxu0 0
    %122 = vmatpush2.bf16.msra.mxu0 0
    %123 = vmatprep.subr.bf16.mxu0 0
    %124 = vmatpush2.bf16.msra.mxu0 0
    %125 = vmatprep.subr.bf16.mxu0 0
    %126 = vmatpush2.bf16.msra.mxu0 0
    %127 = vmatprep.subr.bf16.mxu0 0
    %128 = vmatpush2.bf16.msra.mxu0 0
    %129 = vmatprep.subr.bf16.mxu0 0
    %130 = vmatpush2.bf16.msra.mxu0 0
    %131 = vmatprep.subr.bf16.mxu0 0
    %132 = vmatpush2.bf16.msra.mxu0 0
    %133 = vmatprep.subr.bf16.mxu0 0
    %134 = vmatpush2.bf16.msra.mxu0 0
    %135 = vmatprep.mubr.bf16.mxu0 0
    %136 = vmatmul.mubr.bf16.gmra.mxu0 %v101
    %v137 = vpop.f32.mrf.mxu0
    %v138 = vadd.f32 %v98, %v137
    %v139 = vpop.f32.mrf.mxu0
    %v140 = vpop.f32.mrf.mxu0
    %v141 = vpop.f32.mrf.mxu0
    %142 = vdwg.mxu0
    %143 = vst.msk [vmem:[#allocation7] sm:$0xff] %vm51, %v138
    // Predicated region
    $region30: #{tpu_custom_call.1} parent=1 // pred_check
      _
    $region31: #{tpu_custom_call.1} parent=1 // pred_check_branch
      %145 = sbr.rel (0) target = $region33
    $region32: #{tpu_custom_call.1} parent=1 // pred_region
      %s147 = ssub.s32 128, 128
      %148 = vsyncadd [#allocation4], %s147
      %s150 = sshll.u32 [#allocation7], 4
      %s151 = int_to_ptr.vmem [resolvable:$true] %s150
      %153 = dma.vmem_to_hbm [thread:$0]  %s151, 128, %s5, [#allocation4]
    $region33: #{tpu_custom_call.1} parent=1 // pred_fallthru
      _
    // Predicated region
    $region34: #{tpu_custom_call.1} parent=1 // pred_check
      _
    $region35: #{tpu_custom_call.1} parent=1 // pred_check_branch
      %155 = sbr.rel (0) target = $region37
    $region36: #{tpu_custom_call.1} parent=1 // pred_region
      %156 = dma.done [#allocation4], 128
    $region37: #{tpu_custom_call.1} parent=1 // pred_fallthru
      _
    %157 = vsyncpa [#allocation3], 1
    %158 = vsyncpa [#allocation6], 1
    %159 = vsyncpa [#allocation4], 1

</llo_original>
